<compile_context>
chip_gen: v5e
topology: v5e:2x2
jax: 0.10.0
libtpu: 0.0.40
codegen_flags: <defaults>
</compile_context>

<pallas_src>
import jax
import jax.numpy as jnp
from jax import lax
from jax.experimental import pallas as pl
from jax.experimental.pallas import tpu as pltpu


def lstm_tagger_kernel(emb_ref, wih_ref, whh_ref, b_ref, wlin_ref, blin_ref,
                       out_ref, gx_ref, hseq_ref):
    T = emb_ref.shape[0]
    H = whh_ref.shape[0]

    # ---- Hoisted input projection (off the serial critical path) ----------
    # One (T, E) @ (E, 4H) matmul + bias add, fully pipelined on the MXU.
    gx_ref[...] = (jnp.dot(emb_ref[...], wih_ref[...],
                           preferred_element_type=jnp.float32)
                   + b_ref[...])                                # (T, 4H)

    # ---- Recurrence (fully unrolled: T is static and small) ---------------
    h = jnp.zeros((1, H), jnp.float32)                          # init_hidden()
    c = jnp.zeros((1, H), jnp.float32)

    for t in range(T):
        # Only the recurrent matmul remains per step.
        gates = gx_ref[pl.ds(t, 1), :] + jnp.dot(
            h, whh_ref[...], preferred_element_type=jnp.float32)  # (1, 4H)

        # Two full-width EUP activations over the whole 4H(=128)-lane vreg;
        # lane slices then pick out the i/f/g/o gate groups.
        sig = jax.nn.sigmoid(gates)                             # i, f, -, o
        th = jnp.tanh(gates)                                    # -, -, g, -
        i_g = sig[:, 0 * H:1 * H]
        f_g = sig[:, 1 * H:2 * H]
        g_g = th[:, 2 * H:3 * H]
        o_g = sig[:, 3 * H:4 * H]

        c = f_g * c + i_g * g_g
        h = o_g * jnp.tanh(c)
        hseq_ref[pl.ds(t, 1), :] = h                            # hidden state t

    # ---- Epilogue: linear1 on all hidden states + log_softmax -------------
    logits = jnp.dot(hseq_ref[...], wlin_ref[...],
                     preferred_element_type=jnp.float32) + blin_ref[...]
    m = jnp.max(logits, axis=1, keepdims=True)
    shifted = logits - m
    lse = jnp.log(jnp.sum(jnp.exp(shifted), axis=1, keepdims=True))
    out_ref[...] = shifted - lse


def lstm_tagger_forward(x_tokens, params):
    """x_tokens: (T,) int32 token ids. Returns (T, target_size) log-probs."""
    emb_table, w_ih, w_hh, b_ih, b_hh, w_lin, b_lin = params
    H = w_hh.shape[1]
    C = w_lin.shape[0]
    T = x_tokens.shape[0]

    # Embedding lookup (glue, plain JAX gather outside the kernel).
    embeds = jnp.take(emb_table, x_tokens, axis=0).astype(jnp.float32)  # (T, E)

    # Pre-transpose weights so the kernel does row-vector @ matrix.
    wihT = w_ih.T                       # (E, 4H)
    whhT = w_hh.T                       # (H, 4H)
    b = (b_ih + b_hh).reshape(1, -1)    # (1, 4H)
    wlinT = w_lin.T                     # (H, C)
    blin = b_lin.reshape(1, -1)         # (1, C)

    out = pl.pallas_call(
        lstm_tagger_kernel,
        out_shape=jax.ShapeDtypeStruct((T, C), jnp.float32),
        in_specs=[pl.BlockSpec(memory_space=pltpu.MemorySpace.VMEM)] * 6,
        out_specs=pl.BlockSpec(memory_space=pltpu.MemorySpace.VMEM),
        scratch_shapes=[pltpu.VMEM((T, 4 * H), jnp.float32),   # gates_x
                        pltpu.VMEM((T, H), jnp.float32)],      # hidden states
    )(embeds, wihT, whhT, b, wlinT, blin)
    return out


def init_params(key, embedding_dim, hidden_dim, vocab_size, target_size):
    ks = jax.random.split(key, 7)
    scale = 0.1
    emb_table = jax.random.normal(ks[0], (vocab_size, embedding_dim), jnp.float32)
    w_ih = scale * jax.random.normal(ks[1], (4 * hidden_dim, embedding_dim), jnp.float32)
    w_hh = scale * jax.random.normal(ks[2], (4 * hidden_dim, hidden_dim), jnp.float32)
    b_ih = scale * jax.random.normal(ks[3], (4 * hidden_dim,), jnp.float32)
    b_hh = scale * jax.random.normal(ks[4], (4 * hidden_dim,), jnp.float32)
    w_lin = scale * jax.random.normal(ks[5], (target_size, hidden_dim), jnp.float32)
    b_lin = scale * jax.random.normal(ks[6], (target_size,), jnp.float32)
    return (emb_table, w_ih, w_hh, b_ih, b_hh, w_lin, b_lin)


def reference_forward(x_tokens, params):
    """Pure-JAX reference mirroring torch.nn.LSTM semantics (gate order i,f,g,o)."""
    emb_table, w_ih, w_hh, b_ih, b_hh, w_lin, b_lin = params
    H = w_hh.shape[1]
    embeds = jnp.take(emb_table, x_tokens, axis=0)

    def step(carry, x_t):
        h, c = carry
        gates = x_t @ w_ih.T + b_ih + h @ w_hh.T + b_hh
        i = jax.nn.sigmoid(gates[0 * H:1 * H])
        f = jax.nn.sigmoid(gates[1 * H:2 * H])
        g = jnp.tanh(gates[2 * H:3 * H])
        o = jax.nn.sigmoid(gates[3 * H:4 * H])
        c_new = f * c + i * g
        h_new = o * jnp.tanh(c_new)
        return (h_new, c_new), h_new

    h0 = jnp.zeros((H,), jnp.float32)
    c0 = jnp.zeros((H,), jnp.float32)
    _, hs = lax.scan(step, (h0, c0), embeds)
    logits = hs @ w_lin.T + b_lin
    return jax.nn.log_softmax(logits, axis=1)


if __name__ == "__main__":
    # Small shapes consistent with the module's forward pass.
    embedding_dim = 32
    hidden_dim = 32
    vocab_size = 16
    target_size = 8
    seq_len = 8

    key = jax.random.PRNGKey(0)
    pkey, xkey = jax.random.split(key)
    params = init_params(pkey, embedding_dim, hidden_dim, vocab_size, target_size)
    x = jax.random.randint(xkey, (seq_len,), 0, vocab_size, dtype=jnp.int32)

    out = lstm_tagger_forward(x, params)
    out = jax.block_until_ready(out)

    ref = jax.block_until_ready(reference_forward(x, params))
    assert out.shape == (seq_len, target_size)
    assert jnp.allclose(out, ref, atol=1e-5, rtol=1e-5)

    print("KERNEL_OK")
</pallas_src>

<mosaic_0001>
module attributes {stable_mosaic.version = 11 : i64} {
  func.func @lstm_tagger_kernel(%arg0: memref<8x32xf32, #tpu.memory_space<vmem>>, %arg1: memref<32x128xf32, #tpu.memory_space<vmem>>, %arg2: memref<32x128xf32, #tpu.memory_space<vmem>>, %arg3: memref<1x128xf32, #tpu.memory_space<vmem>>, %arg4: memref<32x8xf32, #tpu.memory_space<vmem>>, %arg5: memref<1x8xf32, #tpu.memory_space<vmem>>, %arg6: memref<8x8xf32, #tpu.memory_space<vmem>>, %arg7: memref<8x128xf32, #tpu.memory_space<vmem>>, %arg8: memref<8x32xf32, #tpu.memory_space<vmem>>) attributes {dimension_semantics = [], scalar_prefetch = 0 : i64, scratch_operands = 2 : i64, tpu.core_type = #tpu.core_type<tc>} {
    %c0 = arith.constant 0 : index
    %c0_0 = arith.constant 0 : index
    %0 = vector.load %arg0[%c0, %c0_0] : memref<8x32xf32, #tpu.memory_space<vmem>>, vector<8x32xf32>
    %c0_1 = arith.constant 0 : index
    %c0_2 = arith.constant 0 : index
    %1 = vector.load %arg1[%c0_1, %c0_2] : memref<32x128xf32, #tpu.memory_space<vmem>>, vector<32x128xf32>
    %cst = arith.constant dense<0.000000e+00> : vector<8x128xf32>
    %2 = tpu.matmul %0, %1, %cst {dimension_numbers = #tpu.dot_dimension_numbers<[1], [0], [0], [1], [0, 0, 1, 1], [], []>} : vector<8x32xf32>, vector<32x128xf32>, vector<8x128xf32> -> vector<8x128xf32>
    %c0_3 = arith.constant 0 : index
    %c0_4 = arith.constant 0 : index
    %3 = vector.load %arg3[%c0_3, %c0_4] : memref<1x128xf32, #tpu.memory_space<vmem>>, vector<1x128xf32>
    %4 = vector.broadcast %3 : vector<1x128xf32> to vector<8x128xf32>
    %5 = arith.addf %2, %4 : vector<8x128xf32>
    %c0_5 = arith.constant 0 : index
    %c0_6 = arith.constant 0 : index
    %6 = vector.load %arg7[%c0_5, %c0_6] : memref<8x128xf32, #tpu.memory_space<vmem>>, vector<8x128xf32>
    tpu.vector_store %arg7[%c0_5, %c0_6], %5 {strides = array<i32>} : memref<8x128xf32, #tpu.memory_space<vmem>>, vector<8x128xf32>,
    %cst_7 = arith.constant 0.000000e+00 : f32
    %7 = vector.broadcast %cst_7 : f32 to vector<1x32xf32>
    %cst_8 = arith.constant 0.000000e+00 : f32
    %8 = vector.broadcast %cst_8 : f32 to vector<1x32xf32>
    %c0_9 = arith.constant 0 : index
    %c0_10 = arith.constant 0 : index
    %9 = vector.load %arg7[%c0_9, %c0_10] : memref<8x128xf32, #tpu.memory_space<vmem>>, vector<1x128xf32>
    %c0_11 = arith.constant 0 : index
    %c0_12 = arith.constant 0 : index
    %10 = vector.load %arg2[%c0_11, %c0_12] : memref<32x128xf32, #tpu.memory_space<vmem>>, vector<32x128xf32>
    %cst_13 = arith.constant dense<0.000000e+00> : vector<1x128xf32>
    %11 = tpu.matmul %7, %10, %cst_13 {dimension_numbers = #tpu.dot_dimension_numbers<[1], [0], [0], [1], [0, 0, 1, 1], [], []>} : vector<1x32xf32>, vector<32x128xf32>, vector<1x128xf32> -> vector<1x128xf32>
    %12 = arith.addf %9, %11 : vector<1x128xf32>
    %13 = arith.negf %12 : vector<1x128xf32>
    %14 = math.exp %13 : vector<1x128xf32>
    %cst_14 = arith.constant 1.000000e+00 : f32
    %15 = vector.broadcast %cst_14 : f32 to vector<1x128xf32>
    %16 = arith.addf %15, %14 : vector<1x128xf32>
    %17 = arith.divf %15, %16 : vector<1x128xf32>
    %18 = math.tanh %12 : vector<1x128xf32>
    %19 = vector.extract_strided_slice %17 {offsets = [0, 0], sizes = [1, 32], strides = [1, 1]} : vector<1x128xf32> to vector<1x32xf32>
    %20 = vector.extract_strided_slice %17 {offsets = [0, 32], sizes = [1, 32], strides = [1, 1]} : vector<1x128xf32> to vector<1x32xf32>
    %21 = vector.extract_strided_slice %18 {offsets = [0, 64], sizes = [1, 32], strides = [1, 1]} : vector<1x128xf32> to vector<1x32xf32>
    %22 = vector.extract_strided_slice %17 {offsets = [0, 96], sizes = [1, 32], strides = [1, 1]} : vector<1x128xf32> to vector<1x32xf32>
    %23 = arith.mulf %20, %8 : vector<1x32xf32>
    %24 = arith.mulf %19, %21 : vector<1x32xf32>
    %25 = arith.addf %23, %24 : vector<1x32xf32>
    %26 = math.tanh %25 : vector<1x32xf32>
    %27 = arith.mulf %22, %26 : vector<1x32xf32>
    %c0_15 = arith.constant 0 : index
    %c0_16 = arith.constant 0 : index
    %28 = vector.load %arg8[%c0_15, %c0_16] : memref<8x32xf32, #tpu.memory_space<vmem>>, vector<1x32xf32>
    tpu.vector_store %arg8[%c0_15, %c0_16], %27 {strides = array<i32>} : memref<8x32xf32, #tpu.memory_space<vmem>>, vector<1x32xf32>,
    %c1 = arith.constant 1 : index
    %c0_17 = arith.constant 0 : index
    %29 = vector.load %arg7[%c1, %c0_17] : memref<8x128xf32, #tpu.memory_space<vmem>>, vector<1x128xf32>
    %c0_18 = arith.constant 0 : index
    %c0_19 = arith.constant 0 : index
    %30 = vector.load %arg2[%c0_18, %c0_19] : memref<32x128xf32, #tpu.memory_space<vmem>>, vector<32x128xf32>
    %cst_20 = arith.constant dense<0.000000e+00> : vector<1x128xf32>
    %31 = tpu.matmul %27, %30, %cst_20 {dimension_numbers = #tpu.dot_dimension_numbers<[1], [0], [0], [1], [0, 0, 1, 1], [], []>} : vector<1x32xf32>, vector<32x128xf32>, vector<1x128xf32> -> vector<1x128xf32>
    %32 = arith.addf %29, %31 : vector<1x128xf32>
    %33 = arith.negf %32 : vector<1x128xf32>
    %34 = math.exp %33 : vector<1x128xf32>
    %cst_21 = arith.constant 1.000000e+00 : f32
    %35 = vector.broadcast %cst_21 : f32 to vector<1x128xf32>
    %36 = arith.addf %35, %34 : vector<1x128xf32>
    %37 = arith.divf %35, %36 : vector<1x128xf32>
    %38 = math.tanh %32 : vector<1x128xf32>
    %39 = vector.extract_strided_slice %37 {offsets = [0, 0], sizes = [1, 32], strides = [1, 1]} : vector<1x128xf32> to vector<1x32xf32>
    %40 = vector.extract_strided_slice %37 {offsets = [0, 32], sizes = [1, 32], strides = [1, 1]} : vector<1x128xf32> to vector<1x32xf32>
    %41 = vector.extract_strided_slice %38 {offsets = [0, 64], sizes = [1, 32], strides = [1, 1]} : vector<1x128xf32> to vector<1x32xf32>
    %42 = vector.extract_strided_slice %37 {offsets = [0, 96], sizes = [1, 32], strides = [1, 1]} : vector<1x128xf32> to vector<1x32xf32>
    %43 = arith.mulf %40, %25 : vector<1x32xf32>
    %44 = arith.mulf %39, %41 : vector<1x32xf32>
    %45 = arith.addf %43, %44 : vector<1x32xf32>
    %46 = math.tanh %45 : vector<1x32xf32>
    %47 = arith.mulf %42, %46 : vector<1x32xf32>
    %c1_22 = arith.constant 1 : index
    %c0_23 = arith.constant 0 : index
    %48 = vector.load %arg8[%c1_22, %c0_23] : memref<8x32xf32, #tpu.memory_space<vmem>>, vector<1x32xf32>
    tpu.vector_store %arg8[%c1_22, %c0_23], %47 {strides = array<i32>} : memref<8x32xf32, #tpu.memory_space<vmem>>, vector<1x32xf32>,
    %c2 = arith.constant 2 : index
    %c0_24 = arith.constant 0 : index
    %49 = vector.load %arg7[%c2, %c0_24] : memref<8x128xf32, #tpu.memory_space<vmem>>, vector<1x128xf32>
    %c0_25 = arith.constant 0 : index
    %c0_26 = arith.constant 0 : index
    %50 = vector.load %arg2[%c0_25, %c0_26] : memref<32x128xf32, #tpu.memory_space<vmem>>, vector<32x128xf32>
    %cst_27 = arith.constant dense<0.000000e+00> : vector<1x128xf32>
    %51 = tpu.matmul %47, %50, %cst_27 {dimension_numbers = #tpu.dot_dimension_numbers<[1], [0], [0], [1], [0, 0, 1, 1], [], []>} : vector<1x32xf32>, vector<32x128xf32>, vector<1x128xf32> -> vector<1x128xf32>
    %52 = arith.addf %49, %51 : vector<1x128xf32>
    %53 = arith.negf %52 : vector<1x128xf32>
    %54 = math.exp %53 : vector<1x128xf32>
    %cst_28 = arith.constant 1.000000e+00 : f32
    %55 = vector.broadcast %cst_28 : f32 to vector<1x128xf32>
    %56 = arith.addf %55, %54 : vector<1x128xf32>
    %57 = arith.divf %55, %56 : vector<1x128xf32>
    %58 = math.tanh %52 : vector<1x128xf32>
    %59 = vector.extract_strided_slice %57 {offsets = [0, 0], sizes = [1, 32], strides = [1, 1]} : vector<1x128xf32> to vector<1x32xf32>
    %60 = vector.extract_strided_slice %57 {offsets = [0, 32], sizes = [1, 32], strides = [1, 1]} : vector<1x128xf32> to vector<1x32xf32>
    %61 = vector.extract_strided_slice %58 {offsets = [0, 64], sizes = [1, 32], strides = [1, 1]} : vector<1x128xf32> to vector<1x32xf32>
    %62 = vector.extract_strided_slice %57 {offsets = [0, 96], sizes = [1, 32], strides = [1, 1]} : vector<1x128xf32> to vector<1x32xf32>
    %63 = arith.mulf %60, %45 : vector<1x32xf32>
    %64 = arith.mulf %59, %61 : vector<1x32xf32>
    %65 = arith.addf %63, %64 : vector<1x32xf32>
    %66 = math.tanh %65 : vector<1x32xf32>
    %67 = arith.mulf %62, %66 : vector<1x32xf32>
    %c2_29 = arith.constant 2 : index
    %c0_30 = arith.constant 0 : index
    %68 = vector.load %arg8[%c2_29, %c0_30] : memref<8x32xf32, #tpu.memory_space<vmem>>, vector<1x32xf32>
    tpu.vector_store %arg8[%c2_29, %c0_30], %67 {strides = array<i32>} : memref<8x32xf32, #tpu.memory_space<vmem>>, vector<1x32xf32>,
    %c3 = arith.constant 3 : index
    %c0_31 = arith.constant 0 : index
    %69 = vector.load %arg7[%c3, %c0_31] : memref<8x128xf32, #tpu.memory_space<vmem>>, vector<1x128xf32>
    %c0_32 = arith.constant 0 : index
    %c0_33 = arith.constant 0 : index
    %70 = vector.load %arg2[%c0_32, %c0_33] : memref<32x128xf32, #tpu.memory_space<vmem>>, vector<32x128xf32>
    %cst_34 = arith.constant dense<0.000000e+00> : vector<1x128xf32>
    %71 = tpu.matmul %67, %70, %cst_34 {dimension_numbers = #tpu.dot_dimension_numbers<[1], [0], [0], [1], [0, 0, 1, 1], [], []>} : vector<1x32xf32>, vector<32x128xf32>, vector<1x128xf32> -> vector<1x128xf32>
    %72 = arith.addf %69, %71 : vector<1x128xf32>
    %73 = arith.negf %72 : vector<1x128xf32>
    %74 = math.exp %73 : vector<1x128xf32>
    %cst_35 = arith.constant 1.000000e+00 : f32
    %75 = vector.broadcast %cst_35 : f32 to vector<1x128xf32>
    %76 = arith.addf %75, %74 : vector<1x128xf32>
    %77 = arith.divf %75, %76 : vector<1x128xf32>
    %78 = math.tanh %72 : vector<1x128xf32>
    %79 = vector.extract_strided_slice %77 {offsets = [0, 0], sizes = [1, 32], strides = [1, 1]} : vector<1x128xf32> to vector<1x32xf32>
    %80 = vector.extract_strided_slice %77 {offsets = [0, 32], sizes = [1, 32], strides = [1, 1]} : vector<1x128xf32> to vector<1x32xf32>
    %81 = vector.extract_strided_slice %78 {offsets = [0, 64], sizes = [1, 32], strides = [1, 1]} : vector<1x128xf32> to vector<1x32xf32>
    %82 = vector.extract_strided_slice %77 {offsets = [0, 96], sizes = [1, 32], strides = [1, 1]} : vector<1x128xf32> to vector<1x32xf32>
    %83 = arith.mulf %80, %65 : vector<1x32xf32>
    %84 = arith.mulf %79, %81 : vector<1x32xf32>
    %85 = arith.addf %83, %84 : vector<1x32xf32>
    %86 = math.tanh %85 : vector<1x32xf32>
    %87 = arith.mulf %82, %86 : vector<1x32xf32>
    %c3_36 = arith.constant 3 : index
    %c0_37 = arith.constant 0 : index
    %88 = vector.load %arg8[%c3_36, %c0_37] : memref<8x32xf32, #tpu.memory_space<vmem>>, vector<1x32xf32>
    tpu.vector_store %arg8[%c3_36, %c0_37], %87 {strides = array<i32>} : memref<8x32xf32, #tpu.memory_space<vmem>>, vector<1x32xf32>,
    %c4 = arith.constant 4 : index
    %c0_38 = arith.constant 0 : index
    %89 = vector.load %arg7[%c4, %c0_38] : memref<8x128xf32, #tpu.memory_space<vmem>>, vector<1x128xf32>
    %c0_39 = arith.constant 0 : index
    %c0_40 = arith.constant 0 : index
    %90 = vector.load %arg2[%c0_39, %c0_40] : memref<32x128xf32, #tpu.memory_space<vmem>>, vector<32x128xf32>
    %cst_41 = arith.constant dense<0.000000e+00> : vector<1x128xf32>
    %91 = tpu.matmul %87, %90, %cst_41 {dimension_numbers = #tpu.dot_dimension_numbers<[1], [0], [0], [1], [0, 0, 1, 1], [], []>} : vector<1x32xf32>, vector<32x128xf32>, vector<1x128xf32> -> vector<1x128xf32>
    %92 = arith.addf %89, %91 : vector<1x128xf32>
    %93 = arith.negf %92 : vector<1x128xf32>
    %94 = math.exp %93 : vector<1x128xf32>
    %cst_42 = arith.constant 1.000000e+00 : f32
    %95 = vector.broadcast %cst_42 : f32 to vector<1x128xf32>
    %96 = arith.addf %95, %94 : vector<1x128xf32>
    %97 = arith.divf %95, %96 : vector<1x128xf32>
    %98 = math.tanh %92 : vector<1x128xf32>
    %99 = vector.extract_strided_slice %97 {offsets = [0, 0], sizes = [1, 32], strides = [1, 1]} : vector<1x128xf32> to vector<1x32xf32>
    %100 = vector.extract_strided_slice %97 {offsets = [0, 32], sizes = [1, 32], strides = [1, 1]} : vector<1x128xf32> to vector<1x32xf32>
    %101 = vector.extract_strided_slice %98 {offsets = [0, 64], sizes = [1, 32], strides = [1, 1]} : vector<1x128xf32> to vector<1x32xf32>
    %102 = vector.extract_strided_slice %97 {offsets = [0, 96], sizes = [1, 32], strides = [1, 1]} : vector<1x128xf32> to vector<1x32xf32>
    %103 = arith.mulf %100, %85 : vector<1x32xf32>
    %104 = arith.mulf %99, %101 : vector<1x32xf32>
    %105 = arith.addf %103, %104 : vector<1x32xf32>
    %106 = math.tanh %105 : vector<1x32xf32>
    %107 = arith.mulf %102, %106 : vector<1x32xf32>
    %c4_43 = arith.constant 4 : index
    %c0_44 = arith.constant 0 : index
    %108 = vector.load %arg8[%c4_43, %c0_44] : memref<8x32xf32, #tpu.memory_space<vmem>>, vector<1x32xf32>
    tpu.vector_store %arg8[%c4_43, %c0_44], %107 {strides = array<i32>} : memref<8x32xf32, #tpu.memory_space<vmem>>, vector<1x32xf32>,
    %c5 = arith.constant 5 : index
    %c0_45 = arith.constant 0 : index
    %109 = vector.load %arg7[%c5, %c0_45] : memref<8x128xf32, #tpu.memory_space<vmem>>, vector<1x128xf32>
    %c0_46 = arith.constant 0 : index
    %c0_47 = arith.constant 0 : index
    %110 = vector.load %arg2[%c0_46, %c0_47] : memref<32x128xf32, #tpu.memory_space<vmem>>, vector<32x128xf32>
    %cst_48 = arith.constant dense<0.000000e+00> : vector<1x128xf32>
    %111 = tpu.matmul %107, %110, %cst_48 {dimension_numbers = #tpu.dot_dimension_numbers<[1], [0], [0], [1], [0, 0, 1, 1], [], []>} : vector<1x32xf32>, vector<32x128xf32>, vector<1x128xf32> -> vector<1x128xf32>
    %112 = arith.addf %109, %111 : vector<1x128xf32>
    %113 = arith.negf %112 : vector<1x128xf32>
    %114 = math.exp %113 : vector<1x128xf32>
    %cst_49 = arith.constant 1.000000e+00 : f32
    %115 = vector.broadcast %cst_49 : f32 to vector<1x128xf32>
    %116 = arith.addf %115, %114 : vector<1x128xf32>
    %117 = arith.divf %115, %116 : vector<1x128xf32>
    %118 = math.tanh %112 : vector<1x128xf32>
    %119 = vector.extract_strided_slice %117 {offsets = [0, 0], sizes = [1, 32], strides = [1, 1]} : vector<1x128xf32> to vector<1x32xf32>
    %120 = vector.extract_strided_slice %117 {offsets = [0, 32], sizes = [1, 32], strides = [1, 1]} : vector<1x128xf32> to vector<1x32xf32>
    %121 = vector.extract_strided_slice %118 {offsets = [0, 64], sizes = [1, 32], strides = [1, 1]} : vector<1x128xf32> to vector<1x32xf32>
    %122 = vector.extract_strided_slice %117 {offsets = [0, 96], sizes = [1, 32], strides = [1, 1]} : vector<1x128xf32> to vector<1x32xf32>
    %123 = arith.mulf %120, %105 : vector<1x32xf32>
    %124 = arith.mulf %119, %121 : vector<1x32xf32>
    %125 = arith.addf %123, %124 : vector<1x32xf32>
    %126 = math.tanh %125 : vector<1x32xf32>
    %127 = arith.mulf %122, %126 : vector<1x32xf32>
    %c5_50 = arith.constant 5 : index
    %c0_51 = arith.constant 0 : index
    %128 = vector.load %arg8[%c5_50, %c0_51] : memref<8x32xf32, #tpu.memory_space<vmem>>, vector<1x32xf32>
    tpu.vector_store %arg8[%c5_50, %c0_51], %127 {strides = array<i32>} : memref<8x32xf32, #tpu.memory_space<vmem>>, vector<1x32xf32>,
    %c6 = arith.constant 6 : index
    %c0_52 = arith.constant 0 : index
    %129 = vector.load %arg7[%c6, %c0_52] : memref<8x128xf32, #tpu.memory_space<vmem>>, vector<1x128xf32>
    %c0_53 = arith.constant 0 : index
    %c0_54 = arith.constant 0 : index
    %130 = vector.load %arg2[%c0_53, %c0_54] : memref<32x128xf32, #tpu.memory_space<vmem>>, vector<32x128xf32>
    %cst_55 = arith.constant dense<0.000000e+00> : vector<1x128xf32>
    %131 = tpu.matmul %127, %130, %cst_55 {dimension_numbers = #tpu.dot_dimension_numbers<[1], [0], [0], [1], [0, 0, 1, 1], [], []>} : vector<1x32xf32>, vector<32x128xf32>, vector<1x128xf32> -> vector<1x128xf32>
    %132 = arith.addf %129, %131 : vector<1x128xf32>
    %133 = arith.negf %132 : vector<1x128xf32>
    %134 = math.exp %133 : vector<1x128xf32>
    %cst_56 = arith.constant 1.000000e+00 : f32
    %135 = vector.broadcast %cst_56 : f32 to vector<1x128xf32>
    %136 = arith.addf %135, %134 : vector<1x128xf32>
    %137 = arith.divf %135, %136 : vector<1x128xf32>
    %138 = math.tanh %132 : vector<1x128xf32>
    %139 = vector.extract_strided_slice %137 {offsets = [0, 0], sizes = [1, 32], strides = [1, 1]} : vector<1x128xf32> to vector<1x32xf32>
    %140 = vector.extract_strided_slice %137 {offsets = [0, 32], sizes = [1, 32], strides = [1, 1]} : vector<1x128xf32> to vector<1x32xf32>
    %141 = vector.extract_strided_slice %138 {offsets = [0, 64], sizes = [1, 32], strides = [1, 1]} : vector<1x128xf32> to vector<1x32xf32>
    %142 = vector.extract_strided_slice %137 {offsets = [0, 96], sizes = [1, 32], strides = [1, 1]} : vector<1x128xf32> to vector<1x32xf32>
    %143 = arith.mulf %140, %125 : vector<1x32xf32>
    %144 = arith.mulf %139, %141 : vector<1x32xf32>
    %145 = arith.addf %143, %144 : vector<1x32xf32>
    %146 = math.tanh %145 : vector<1x32xf32>
    %147 = arith.mulf %142, %146 : vector<1x32xf32>
    %c6_57 = arith.constant 6 : index
    %c0_58 = arith.constant 0 : index
    %148 = vector.load %arg8[%c6_57, %c0_58] : memref<8x32xf32, #tpu.memory_space<vmem>>, vector<1x32xf32>
    tpu.vector_store %arg8[%c6_57, %c0_58], %147 {strides = array<i32>} : memref<8x32xf32, #tpu.memory_space<vmem>>, vector<1x32xf32>,
    %c7 = arith.constant 7 : index
    %c0_59 = arith.constant 0 : index
    %149 = vector.load %arg7[%c7, %c0_59] : memref<8x128xf32, #tpu.memory_space<vmem>>, vector<1x128xf32>
    %c0_60 = arith.constant 0 : index
    %c0_61 = arith.constant 0 : index
    %150 = vector.load %arg2[%c0_60, %c0_61] : memref<32x128xf32, #tpu.memory_space<vmem>>, vector<32x128xf32>
    %cst_62 = arith.constant dense<0.000000e+00> : vector<1x128xf32>
    %151 = tpu.matmul %147, %150, %cst_62 {dimension_numbers = #tpu.dot_dimension_numbers<[1], [0], [0], [1], [0, 0, 1, 1], [], []>} : vector<1x32xf32>, vector<32x128xf32>, vector<1x128xf32> -> vector<1x128xf32>
    %152 = arith.addf %149, %151 : vector<1x128xf32>
    %153 = arith.negf %152 : vector<1x128xf32>
    %154 = math.exp %153 : vector<1x128xf32>
    %cst_63 = arith.constant 1.000000e+00 : f32
    %155 = vector.broadcast %cst_63 : f32 to vector<1x128xf32>
    %156 = arith.addf %155, %154 : vector<1x128xf32>
    %157 = arith.divf %155, %156 : vector<1x128xf32>
    %158 = math.tanh %152 : vector<1x128xf32>
    %159 = vector.extract_strided_slice %157 {offsets = [0, 0], sizes = [1, 32], strides = [1, 1]} : vector<1x128xf32> to vector<1x32xf32>
    %160 = vector.extract_strided_slice %157 {offsets = [0, 32], sizes = [1, 32], strides = [1, 1]} : vector<1x128xf32> to vector<1x32xf32>
    %161 = vector.extract_strided_slice %158 {offsets = [0, 64], sizes = [1, 32], strides = [1, 1]} : vector<1x128xf32> to vector<1x32xf32>
    %162 = vector.extract_strided_slice %157 {offsets = [0, 96], sizes = [1, 32], strides = [1, 1]} : vector<1x128xf32> to vector<1x32xf32>
    %163 = arith.mulf %160, %145 : vector<1x32xf32>
    %164 = arith.mulf %159, %161 : vector<1x32xf32>
    %165 = arith.addf %163, %164 : vector<1x32xf32>
    %166 = math.tanh %165 : vector<1x32xf32>
    %167 = arith.mulf %162, %166 : vector<1x32xf32>
    %c7_64 = arith.constant 7 : index
    %c0_65 = arith.constant 0 : index
    %168 = vector.load %arg8[%c7_64, %c0_65] : memref<8x32xf32, #tpu.memory_space<vmem>>, vector<1x32xf32>
    tpu.vector_store %arg8[%c7_64, %c0_65], %167 {strides = array<i32>} : memref<8x32xf32, #tpu.memory_space<vmem>>, vector<1x32xf32>,
    %c0_66 = arith.constant 0 : index
    %c0_67 = arith.constant 0 : index
    %169 = vector.load %arg8[%c0_66, %c0_67] : memref<8x32xf32, #tpu.memory_space<vmem>>, vector<8x32xf32>
    %c0_68 = arith.constant 0 : index
    %c0_69 = arith.constant 0 : index
    %170 = vector.load %arg4[%c0_68, %c0_69] : memref<32x8xf32, #tpu.memory_space<vmem>>, vector<32x8xf32>
    %cst_70 = arith.constant dense<0.000000e+00> : vector<8x8xf32>
    %171 = tpu.matmul %169, %170, %cst_70 {dimension_numbers = #tpu.dot_dimension_numbers<[1], [0], [0], [1], [0, 0, 1, 1], [], []>} : vector<8x32xf32>, vector<32x8xf32>, vector<8x8xf32> -> vector<8x8xf32>
    %c0_71 = arith.constant 0 : index
    %c0_72 = arith.constant 0 : index
    %172 = vector.load %arg5[%c0_71, %c0_72] : memref<1x8xf32, #tpu.memory_space<vmem>>, vector<1x8xf32>
    %173 = vector.broadcast %172 : vector<1x8xf32> to vector<8x8xf32>
    %174 = arith.addf %171, %173 : vector<8x8xf32>
    %cst_73 = arith.constant dense<0xFF800000> : vector<8xf32>
    %175 = vector.multi_reduction <maximumf>, %174, %cst_73 [1] : vector<8x8xf32> to vector<8xf32>
    %176 = vector.shape_cast %175 : vector<8xf32> to vector<8x1xf32>
    %177 = vector.broadcast %176 : vector<8x1xf32> to vector<8x8xf32>
    %178 = arith.subf %174, %177 : vector<8x8xf32>
    %179 = math.exp %178 : vector<8x8xf32>
    %cst_74 = arith.constant dense<0.000000e+00> : vector<8xf32>
    %180 = vector.multi_reduction <add>, %179, %cst_74 [1] : vector<8x8xf32> to vector<8xf32>
    %181 = vector.shape_cast %180 : vector<8xf32> to vector<8x1xf32>
    %182 = math.log %181 : vector<8x1xf32>
    %183 = vector.broadcast %182 : vector<8x1xf32> to vector<8x8xf32>
    %184 = arith.subf %178, %183 : vector<8x8xf32>
    %c0_75 = arith.constant 0 : index
    %c0_76 = arith.constant 0 : index
    %185 = vector.load %arg6[%c0_75, %c0_76] : memref<8x8xf32, #tpu.memory_space<vmem>>, vector<8x8xf32>
    tpu.vector_store %arg6[%c0_75, %c0_76], %184 {strides = array<i32>} : memref<8x8xf32, #tpu.memory_space<vmem>>, vector<8x8xf32>,
    return
  }
}

</mosaic_0001>

<llo_original>
// kernel: tpu_custom_call.1
$region0: #{tpu_custom_call.1}
  #allocation0 [shape = 'u32[]', space=smem, size = 0x4, offset = 0x4, fixed_abs, tag = 'smem constant byte address 0x4 - core index']
  #allocation1 [shape = 'u32[72,128]{1,0:T(1,128)}', space=vmem, size = 0x9000, scoped, tag = 'internal scratch']
  #allocation2 [shape = 'f32[8,128]{1,0:T(8,128)}', space=vmem, size = 0x1000, scoped, tag = 'scratch operand']
  #allocation3 [shape = 'f32[8,32]{1,0:T(8,128)}', space=vmem, size = 0x1000, scoped, tag = 'scratch operand']
  %s0 = inlined_call_operand.vmem [shape: f32[8,32], index: 0, kind: input, shape index: {}]
  %s1 = inlined_call_operand.vmem [shape: f32[32,128], index: 1, kind: input, shape index: {}]
  %s2 = inlined_call_operand.hbm [shape: f32[32,128], index: 2, kind: input, shape index: {}]
  %s3 = inlined_call_operand.vmem [shape: f32[1,128], index: 3, kind: input, shape index: {}]
  %s4 = inlined_call_operand.vmem [shape: f32[32,8], index: 4, kind: input, shape index: {}]
  %s5 = inlined_call_operand.vmem [shape: f32[1,8], index: 5, kind: input, shape index: {}]
  %s6 = inlined_call_operand.hbm [shape: f32[8,8], index: 6, kind: output, shape index: {}]
  %s7 = sld [smem:[#allocation0]]
  $region38: #{tpu_custom_call.1} parent=0
    _
  %s9 = ssub.s32 1, %s7
  %s10 = scalar_select 0, %s9, %s7
  $region1: #{tpu_custom_call.1} parent=0
    #allocation4 [shape = 'u8[16384]{0}', space=vmem, size = 0x4000, scoped, tag = 'input window, operand 2, single buffered']
    #allocation5 [shape = 's32[1]{0}', space=sflag, size = 0x4, scoped, tag = 'scoped memory for tpu_custom_call.1']
    #allocation6 [shape = 's32[1]{0}', space=sflag, size = 0x4, scoped, tag = 'scoped memory for tpu_custom_call.1']
    #allocation7 [shape = 'u8[4096]{0}', space=vmem, size = 0x1000, scoped, tag = 'output window, operand 0, single buffered']
    %11 = vsyncpa [#allocation5], 0
    %12 = vsyncpa [#allocation6], 0
    // Predicated region
    $region2: #{tpu_custom_call.1} parent=1 // pred_check
      _
    $region3: #{tpu_custom_call.1} parent=1 // pred_check_branch
      %14 = sbr.rel (0) target = $region5
    $region4: #{tpu_custom_call.1} parent=1 // pred_region
      _
    $region5: #{tpu_custom_call.1} parent=1 // pred_fallthru
      _
    // Predicated region
    $region6: #{tpu_custom_call.1} parent=1 // pred_check
      _
    $region7: #{tpu_custom_call.1} parent=1 // pred_check_branch
      %16 = sbr.rel (0) target = $region9
    $region8: #{tpu_custom_call.1} parent=1 // pred_region
      _
    $region9: #{tpu_custom_call.1} parent=1 // pred_fallthru
      _
    // Predicated region
    $region10: #{tpu_custom_call.1} parent=1 // pred_check
      _
    $region11: #{tpu_custom_call.1} parent=1 // pred_check_branch
      %18 = sbr.rel (0) target = $region13
    $region12: #{tpu_custom_call.1} parent=1 // pred_region
      %20 = vsyncadd [#allocation5], 0
      %s21 = sshll.u32 %s2, 4
      %s22 = int_to_ptr.hbm [resolvable:$true] %s21
      %s23 = sshll.u32 [#allocation4], 4
      %s24 = int_to_ptr.vmem [resolvable:$true] %s23
      %29 = dma.hbm_to_vmem [thread:$0]  %s22, 512, %s24, [#allocation5], 128, 128, 8
    $region13: #{tpu_custom_call.1} parent=1 // pred_fallthru
      _
    // Predicated region
    $region14: #{tpu_custom_call.1} parent=1 // pred_check
      _
    $region15: #{tpu_custom_call.1} parent=1 // pred_check_branch
      %31 = sbr.rel (0) target = $region17
    $region16: #{tpu_custom_call.1} parent=1 // pred_region
      _
    $region17: #{tpu_custom_call.1} parent=1 // pred_fallthru
      _
    // Predicated region
    $region18: #{tpu_custom_call.1} parent=1 // pred_check
      _
    $region19: #{tpu_custom_call.1} parent=1 // pred_check_branch
      %33 = sbr.rel (0) target = $region21
    $region20: #{tpu_custom_call.1} parent=1 // pred_region
      _
    $region21: #{tpu_custom_call.1} parent=1 // pred_fallthru
      _
    // Predicated region
    $region22: #{tpu_custom_call.1} parent=1 // pred_check
      _
    $region23: #{tpu_custom_call.1} parent=1 // pred_check_branch
      %35 = sbr.rel (0) target = $region25
    $region24: #{tpu_custom_call.1} parent=1 // pred_region
      _
    $region25: #{tpu_custom_call.1} parent=1 // pred_fallthru
      _
    // Predicated region
    $region26: #{tpu_custom_call.1} parent=1 // pred_check
      _
    $region27: #{tpu_custom_call.1} parent=1 // pred_check_branch
      %37 = sbr.rel (0) target = $region29
    $region28: #{tpu_custom_call.1} parent=1 // pred_region
      %39 = dma.done [#allocation5], 512
    $region29: #{tpu_custom_call.1} parent=1 // pred_fallthru
      _
    %v40 = vld [vmem:[%s0] sm:$0xff]
    %v41 = vld [vmem:[%s1] sm:$0xff]
    %v42 = vld [vmem:[%s1 + $0x8] sm:$0xff]
    %v43 = vld [vmem:[%s1 + $0x10] sm:$0xff]
    %v44 = vld [vmem:[%s1 + $0x18] sm:$0xff]
    %v45 = vld [vmem:[%s3] sm:$0x1]
    %v47 = vperm.slane %v45, 0
    %vm49 = vcmask 261120
    %v51 = vsel %vm49, %v40, 0
    %53 = vmatpush.msra.mxu0 0.0
    %54 = vmatpush.msra.mxu0 0.0
    %55 = vmatpush.msra.mxu0 0.0
    %56 = vmatpush.msra.mxu0 0.0
    %57 = vmatpush.msra.mxu0 0.0
    %58 = vmatpush.msra.mxu0 0.0
    %59 = vmatpush.msra.mxu0 0.0
    %60 = vmatpush.msra.mxu0 0.0
    %61 = vmatpush.msra.mxu0 0.0
    %62 = vmatpush.msra.mxu0 0.0
    %63 = vmatpush.msra.mxu0 0.0
    %64 = vmatpush.msra.mxu0 0.0
    %65 = vmatpush.msra.mxu0 %v44
    %66 = vmatpush.msra.mxu0 %v43
    %67 = vmatpush.msra.mxu0 %v42
    %68 = vmatpush.msra.mxu0 %v41
    %69 = vmatmul.f32.gmra.mxu0 %v51
    %v70 = vpop.f32.mrf.mxu0
    %v71 = vadd.f32 %v47, %v70
    %72 = vdwg.mxu0
    %73 = vst [vmem:[#allocation2] sm:$0xff] %v71
    %v74 = vld [vmem:[#allocation2] sm:$0x1]
    %v75 = vld [vmem:[#allocation4] sm:$0xff]
    %v76 = vld [vmem:[#allocation4 + $0x8] sm:$0xff]
    %v77 = vld [vmem:[#allocation4 + $0x10] sm:$0xff]
    %v78 = vld [vmem:[#allocation4 + $0x18] sm:$0xff]
    %v80 = vsel %vm49, 0.0, 0
    %82 = vmatpush.msra.mxu0 0.0
    %83 = vmatpush.msra.mxu0 0.0
    %84 = vmatpush.msra.mxu0 0.0
    %85 = vmatpush.msra.mxu0 0.0
    %86 = vmatpush.msra.mxu0 0.0
    %87 = vmatpush.msra.mxu0 0.0
    %88 = vmatpush.msra.mxu0 0.0
    %89 = vmatpush.msra.mxu0 0.0
    %90 = vmatpush.msra.mxu0 0.0
    %91 = vmatpush.msra.mxu0 0.0
    %92 = vmatpush.msra.mxu0 0.0
    %93 = vmatpush.msra.mxu0 0.0
    %94 = vmatpush.msra.mxu0 %v78
    %95 = vmatpush.msra.mxu0 %v77
    %96 = vmatpush.msra.mxu0 %v76
    %97 = vmatpush.msra.mxu0 %v75
    %98 = vmatmul.f32.gmra.mxu0 %v80
    %v99 = vpop.f32.mrf.mxu0
    %v100 = vadd.f32 0.0, %v99
    %101 = vdwg.mxu0
    %v102 = vadd.f32 %v74, %v100
    %v103 = vxor.u32 %v102, 2147483648
    %v104 = vmul.f32 %v103, 1.442695
    %v105 = vpow.pop %v104
    %v106 = vadd.f32 %v105, 1.0
    %v107 = vrcp.pop %v106
    %v108 = vmul.f32 %v106, %v107
    %v109 = vsub.f32 1.0, %v108
    %v110 = vmul.f32 %v107, %v109
    %v111 = vadd.f32 %v107, %v110
    %vm112 = vweird.f32 %v106
    %vm113 = vweird.f32 %v107
    %vm114 = vmor %vm112, %vm113
    %v115 = vsel %vm114, %v107, %v111
    %v116 = vand.u32 2147483647, %v106
    %vm117 = vcmp.eq.f32.partialorder %v116, 8.507059e+37
    %v118 = vand.u32 %v106, 2147483648
    %v119 = vor.u32 1.1754944e-38, %v118
    %v120 = vsel %vm117, %v119, %v115
    %v121 = vmul.f32 1.0, %v120
    %v122 = vtanh.pop %v102
    %v123 = vmul.f32 %v121, 0.0
    %125 = vrot.lane.b32.xlu0 %v122, 64
    %v126 = vpop.permute.xlu0 %125
    %v128 = vmul.f32 %v121, %v126
    %130 = vrot.lane.b32.xlu0 %v128, 32
    %v131 = vpop.permute.xlu0 %130
    %v133 = vadd.f32 %v123, %v131
    %v134 = vtanh.pop %v133
    %136 = vrot.lane.b32.xlu0 %v134, 64
    %v137 = vpop.permute.xlu0 %136
    %v139 = vmul.f32 %v121, %v137
    %141 = vrot.lane.b32.xlu0 %v139, 32
    %v142 = vpop.permute.xlu0 %141
    %vm144 = vcmask 253952
    %145 = vst.msk [vmem:[#allocation3] sm:$0x1] %vm144, %v142
    %v146 = vld [vmem:[#allocation2 + $0x1] sm:$0x1]
    %v147 = vld [vmem:[#allocation4] sm:$0xff]
    %v148 = vld [vmem:[#allocation4 + $0x8] sm:$0xff]
    %v149 = vld [vmem:[#allocation4 + $0x10] sm:$0xff]
    %v150 = vld [vmem:[#allocation4 + $0x18] sm:$0xff]
    %v151 = vsel %vm49, %v142, 0
    %153 = vmatpush.msra.mxu0 0.0
    %154 = vmatpush.msra.mxu0 0.0
    %155 = vmatpush.msra.mxu0 0.0
    %156 = vmatpush.msra.mxu0 0.0
    %157 = vmatpush.msra.mxu0 0.0
    %158 = vmatpush.msra.mxu0 0.0
    %159 = vmatpush.msra.mxu0 0.0
    %160 = vmatpush.msra.mxu0 0.0
    %161 = vmatpush.msra.mxu0 0.0
    %162 = vmatpush.msra.mxu0 0.0
    %163 = vmatpush.msra.mxu0 0.0
    %164 = vmatpush.msra.mxu0 0.0
    %165 = vmatpush.msra.mxu0 %v150
    %166 = vmatpush.msra.mxu0 %v149
    %167 = vmatpush.msra.mxu0 %v148
    %168 = vmatpush.msra.mxu0 %v147
    %169 = vmatmul.f32.gmra.mxu0 %v151
    %v170 = vpop.f32.mrf.mxu0
    %v171 = vadd.f32 0.0, %v170
    %172 = vdwg.mxu0
    %v173 = vadd.f32 %v146, %v171
    %v174 = vxor.u32 %v173, 2147483648
    %v175 = vmul.f32 %v174, 1.442695
    %v176 = vpow.pop %v175
    %v177 = vadd.f32 %v176, 1.0
    %v178 = vrcp.pop %v177
    %v179 = vmul.f32 %v177, %v178
    %v180 = vsub.f32 1.0, %v179
    %v181 = vmul.f32 %v178, %v180
    %v182 = vadd.f32 %v178, %v181
    %vm183 = vweird.f32 %v177
    %vm184 = vweird.f32 %v178
    %vm185 = vmor %vm183, %vm184
    %v186 = vsel %vm185, %v178, %v182
    %v187 = vand.u32 2147483647, %v177
    %vm188 = vcmp.eq.f32.partialorder %v187, 8.507059e+37
    %v189 = vand.u32 %v177, 2147483648
    %v190 = vor.u32 1.1754944e-38, %v189
    %v191 = vsel %vm188, %v190, %v186
    %v192 = vmul.f32 1.0, %v191
    %v193 = vtanh.pop %v173
    %v194 = vmul.f32 %v192, %v133
    %196 = vrot.lane.b32.xlu0 %v193, 64
    %v197 = vpop.permute.xlu0 %196
    %v199 = vmul.f32 %v192, %v197
    %201 = vrot.lane.b32.xlu0 %v199, 32
    %v202 = vpop.permute.xlu0 %201
    %v204 = vadd.f32 %v194, %v202
    %v205 = vtanh.pop %v204
    %207 = vrot.lane.b32.xlu0 %v205, 64
    %v208 = vpop.permute.xlu0 %207
    %v210 = vmul.f32 %v192, %v208
    %212 = vrot.lane.b32.xlu0 %v210, 32
    %v213 = vpop.permute.xlu0 %212
    %215 = vst.msk [vmem:[#allocation3 + $0x1] sm:$0x1] %vm144, %v213
    %v216 = vld [vmem:[#allocation2 + $0x2] sm:$0x1]
    %v217 = vld [vmem:[#allocation4] sm:$0xff]
    %v218 = vld [vmem:[#allocation4 + $0x8] sm:$0xff]
    %v219 = vld [vmem:[#allocation4 + $0x10] sm:$0xff]
    %v220 = vld [vmem:[#allocation4 + $0x18] sm:$0xff]
    %v221 = vsel %vm49, %v213, 0
    %223 = vmatpush.msra.mxu0 0.0
    %224 = vmatpush.msra.mxu0 0.0
    %225 = vmatpush.msra.mxu0 0.0
    %226 = vmatpush.msra.mxu0 0.0
    %227 = vmatpush.msra.mxu0 0.0
    %228 = vmatpush.msra.mxu0 0.0
    %229 = vmatpush.msra.mxu0 0.0
    %230 = vmatpush.msra.mxu0 0.0
    %231 = vmatpush.msra.mxu0 0.0
    %232 = vmatpush.msra.mxu0 0.0
    %233 = vmatpush.msra.mxu0 0.0
    %234 = vmatpush.msra.mxu0 0.0
    %235 = vmatpush.msra.mxu0 %v220
    %236 = vmatpush.msra.mxu0 %v219
    %237 = vmatpush.msra.mxu0 %v218
    %238 = vmatpush.msra.mxu0 %v217
    %239 = vmatmul.f32.gmra.mxu0 %v221
    %v240 = vpop.f32.mrf.mxu0
    %v241 = vadd.f32 0.0, %v240
    %242 = vdwg.mxu0
    %v243 = vadd.f32 %v216, %v241
    %v244 = vxor.u32 %v243, 2147483648
    %v245 = vmul.f32 %v244, 1.442695
    %v246 = vpow.pop %v245
    %v247 = vadd.f32 %v246, 1.0
    %v248 = vrcp.pop %v247
    %v249 = vmul.f32 %v247, %v248
    %v250 = vsub.f32 1.0, %v249
    %v251 = vmul.f32 %v248, %v250
    %v252 = vadd.f32 %v248, %v251
    %vm253 = vweird.f32 %v247
    %vm254 = vweird.f32 %v248
    %vm255 = vmor %vm253, %vm254
    %v256 = vsel %vm255, %v248, %v252
    %v257 = vand.u32 2147483647, %v247
    %vm258 = vcmp.eq.f32.partialorder %v257, 8.507059e+37
    %v259 = vand.u32 %v247, 2147483648
    %v260 = vor.u32 1.1754944e-38, %v259
    %v261 = vsel %vm258, %v260, %v256
    %v262 = vmul.f32 1.0, %v261
    %v263 = vtanh.pop %v243
    %v264 = vmul.f32 %v262, %v204
    %266 = vrot.lane.b32.xlu0 %v263, 64
    %v267 = vpop.permute.xlu0 %266
    %v269 = vmul.f32 %v262, %v267
    %271 = vrot.lane.b32.xlu0 %v269, 32
    %v272 = vpop.permute.xlu0 %271
    %v274 = vadd.f32 %v264, %v272
    %v275 = vtanh.pop %v274
    %277 = vrot.lane.b32.xlu0 %v275, 64
    %v278 = vpop.permute.xlu0 %277
    %v280 = vmul.f32 %v262, %v278
    %282 = vrot.lane.b32.xlu0 %v280, 32
    %v283 = vpop.permute.xlu0 %282
    %285 = vst.msk [vmem:[#allocation3 + $0x2] sm:$0x1] %vm144, %v283
    %v286 = vld [vmem:[#allocation2 + $0x3] sm:$0x1]
    %v287 = vld [vmem:[#allocation4] sm:$0xff]
    %v288 = vld [vmem:[#allocation4 + $0x8] sm:$0xff]
    %v289 = vld [vmem:[#allocation4 + $0x10] sm:$0xff]
    %v290 = vld [vmem:[#allocation4 + $0x18] sm:$0xff]
    %v291 = vsel %vm49, %v283, 0
    %293 = vmatpush.msra.mxu0 0.0
    %294 = vmatpush.msra.mxu0 0.0
    %295 = vmatpush.msra.mxu0 0.0
    %296 = vmatpush.msra.mxu0 0.0
    %297 = vmatpush.msra.mxu0 0.0
    %298 = vmatpush.msra.mxu0 0.0
    %299 = vmatpush.msra.mxu0 0.0
    %300 = vmatpush.msra.mxu0 0.0
    %301 = vmatpush.msra.mxu0 0.0
    %302 = vmatpush.msra.mxu0 0.0
    %303 = vmatpush.msra.mxu0 0.0
    %304 = vmatpush.msra.mxu0 0.0
    %305 = vmatpush.msra.mxu0 %v290
    %306 = vmatpush.msra.mxu0 %v289
    %307 = vmatpush.msra.mxu0 %v288
    %308 = vmatpush.msra.mxu0 %v287
    %309 = vmatmul.f32.gmra.mxu0 %v291
    %v310 = vpop.f32.mrf.mxu0
    %v311 = vadd.f32 0.0, %v310
    %312 = vdwg.mxu0
    %v313 = vadd.f32 %v286, %v311
    %v314 = vxor.u32 %v313, 2147483648
    %v315 = vmul.f32 %v314, 1.442695
    %v316 = vpow.pop %v315
    %v317 = vadd.f32 %v316, 1.0
    %v318 = vrcp.pop %v317
    %v319 = vmul.f32 %v317, %v318
    %v320 = vsub.f32 1.0, %v319
    %v321 = vmul.f32 %v318, %v320
    %v322 = vadd.f32 %v318, %v321
    %vm323 = vweird.f32 %v317
    %vm324 = vweird.f32 %v318
    %vm325 = vmor %vm323, %vm324
    %v326 = vsel %vm325, %v318, %v322
    %v327 = vand.u32 2147483647, %v317
    %vm328 = vcmp.eq.f32.partialorder %v327, 8.507059e+37
    %v329 = vand.u32 %v317, 2147483648
    %v330 = vor.u32 1.1754944e-38, %v329
    %v331 = vsel %vm328, %v330, %v326
    %v332 = vmul.f32 1.0, %v331
    %v333 = vtanh.pop %v313
    %v334 = vmul.f32 %v332, %v274
    %336 = vrot.lane.b32.xlu0 %v333, 64
    %v337 = vpop.permute.xlu0 %336
    %v339 = vmul.f32 %v332, %v337
    %341 = vrot.lane.b32.xlu0 %v339, 32
    %v342 = vpop.permute.xlu0 %341
    %v344 = vadd.f32 %v334, %v342
    %v345 = vtanh.pop %v344
    %347 = vrot.lane.b32.xlu0 %v345, 64
    %v348 = vpop.permute.xlu0 %347
    %v350 = vmul.f32 %v332, %v348
    %352 = vrot.lane.b32.xlu0 %v350, 32
    %v353 = vpop.permute.xlu0 %352
    %355 = vst.msk [vmem:[#allocation3 + $0x3] sm:$0x1] %vm144, %v353
    %v356 = vld [vmem:[#allocation2 + $0x4] sm:$0x1]
    %v357 = vld [vmem:[#allocation4] sm:$0xff]
    %v358 = vld [vmem:[#allocation4 + $0x8] sm:$0xff]
    %v359 = vld [vmem:[#allocation4 + $0x10] sm:$0xff]
    %v360 = vld [vmem:[#allocation4 + $0x18] sm:$0xff]
    %v361 = vsel %vm49, %v353, 0
    %363 = vmatpush.msra.mxu0 0.0
    %364 = vmatpush.msra.mxu0 0.0
    %365 = vmatpush.msra.mxu0 0.0
    %366 = vmatpush.msra.mxu0 0.0
    %367 = vmatpush.msra.mxu0 0.0
    %368 = vmatpush.msra.mxu0 0.0
    %369 = vmatpush.msra.mxu0 0.0
    %370 = vmatpush.msra.mxu0 0.0
    %371 = vmatpush.msra.mxu0 0.0
    %372 = vmatpush.msra.mxu0 0.0
    %373 = vmatpush.msra.mxu0 0.0
    %374 = vmatpush.msra.mxu0 0.0
    %375 = vmatpush.msra.mxu0 %v360
    %376 = vmatpush.msra.mxu0 %v359
    %377 = vmatpush.msra.mxu0 %v358
    %378 = vmatpush.msra.mxu0 %v357
    %379 = vmatmul.f32.gmra.mxu0 %v361
    %v380 = vpop.f32.mrf.mxu0
    %v381 = vadd.f32 0.0, %v380
    %382 = vdwg.mxu0
    %v383 = vadd.f32 %v356, %v381
    %v384 = vxor.u32 %v383, 2147483648
    %v385 = vmul.f32 %v384, 1.442695
    %v386 = vpow.pop %v385
    %v387 = vadd.f32 %v386, 1.0
    %v388 = vrcp.pop %v387
    %v389 = vmul.f32 %v387, %v388
    %v390 = vsub.f32 1.0, %v389
    %v391 = vmul.f32 %v388, %v390
    %v392 = vadd.f32 %v388, %v391
    %vm393 = vweird.f32 %v387
    %vm394 = vweird.f32 %v388
    %vm395 = vmor %vm393, %vm394
    %v396 = vsel %vm395, %v388, %v392
    %v397 = vand.u32 2147483647, %v387
    %vm398 = vcmp.eq.f32.partialorder %v397, 8.507059e+37
    %v399 = vand.u32 %v387, 2147483648
    %v400 = vor.u32 1.1754944e-38, %v399
    %v401 = vsel %vm398, %v400, %v396
    %v402 = vmul.f32 1.0, %v401
    %v403 = vtanh.pop %v383
    %v404 = vmul.f32 %v402, %v344
    %406 = vrot.lane.b32.xlu0 %v403, 64
    %v407 = vpop.permute.xlu0 %406
    %v409 = vmul.f32 %v402, %v407
    %411 = vrot.lane.b32.xlu0 %v409, 32
    %v412 = vpop.permute.xlu0 %411
    %v414 = vadd.f32 %v404, %v412
    %v415 = vtanh.pop %v414
    %417 = vrot.lane.b32.xlu0 %v415, 64
    %v418 = vpop.permute.xlu0 %417
    %v420 = vmul.f32 %v402, %v418
    %422 = vrot.lane.b32.xlu0 %v420, 32
    %v423 = vpop.permute.xlu0 %422
    %425 = vst.msk [vmem:[#allocation3 + $0x4] sm:$0x1] %vm144, %v423
    %v426 = vld [vmem:[#allocation2 + $0x5] sm:$0x1]
    %v427 = vld [vmem:[#allocation4] sm:$0xff]
    %v428 = vld [vmem:[#allocation4 + $0x8] sm:$0xff]
    %v429 = vld [vmem:[#allocation4 + $0x10] sm:$0xff]
    %v430 = vld [vmem:[#allocation4 + $0x18] sm:$0xff]
    %v431 = vsel %vm49, %v423, 0
    %433 = vmatpush.msra.mxu0 0.0
    %434 = vmatpush.msra.mxu0 0.0
    %435 = vmatpush.msra.mxu0 0.0
    %436 = vmatpush.msra.mxu0 0.0
    %437 = vmatpush.msra.mxu0 0.0
    %438 = vmatpush.msra.mxu0 0.0
    %439 = vmatpush.msra.mxu0 0.0
    %440 = vmatpush.msra.mxu0 0.0
    %441 = vmatpush.msra.mxu0 0.0
    %442 = vmatpush.msra.mxu0 0.0
    %443 = vmatpush.msra.mxu0 0.0
    %444 = vmatpush.msra.mxu0 0.0
    %445 = vmatpush.msra.mxu0 %v430
    %446 = vmatpush.msra.mxu0 %v429
    %447 = vmatpush.msra.mxu0 %v428
    %448 = vmatpush.msra.mxu0 %v427
    %449 = vmatmul.f32.gmra.mxu0 %v431
    %v450 = vpop.f32.mrf.mxu0
    %v451 = vadd.f32 0.0, %v450
    %452 = vdwg.mxu0
    %v453 = vadd.f32 %v426, %v451
    %v454 = vxor.u32 %v453, 2147483648
    %v455 = vmul.f32 %v454, 1.442695
    %v456 = vpow.pop %v455
    %v457 = vadd.f32 %v456, 1.0
    %v458 = vrcp.pop %v457
    %v459 = vmul.f32 %v457, %v458
    %v460 = vsub.f32 1.0, %v459
    %v461 = vmul.f32 %v458, %v460
    %v462 = vadd.f32 %v458, %v461
    %vm463 = vweird.f32 %v457
    %vm464 = vweird.f32 %v458
    %vm465 = vmor %vm463, %vm464
    %v466 = vsel %vm465, %v458, %v462
    %v467 = vand.u32 2147483647, %v457
    %vm468 = vcmp.eq.f32.partialorder %v467, 8.507059e+37
    %v469 = vand.u32 %v457, 2147483648
    %v470 = vor.u32 1.1754944e-38, %v469
    %v471 = vsel %vm468, %v470, %v466
    %v472 = vmul.f32 1.0, %v471
    %v473 = vtanh.pop %v453
    %v474 = vmul.f32 %v472, %v414
    %476 = vrot.lane.b32.xlu0 %v473, 64
    %v477 = vpop.permute.xlu0 %476
    %v479 = vmul.f32 %v472, %v477
    %481 = vrot.lane.b32.xlu0 %v479, 32
    %v482 = vpop.permute.xlu0 %481
    %v484 = vadd.f32 %v474, %v482
    %v485 = vtanh.pop %v484
    %487 = vrot.lane.b32.xlu0 %v485, 64
    %v488 = vpop.permute.xlu0 %487
    %v490 = vmul.f32 %v472, %v488
    %492 = vrot.lane.b32.xlu0 %v490, 32
    %v493 = vpop.permute.xlu0 %492
    %495 = vst.msk [vmem:[#allocation3 + $0x5] sm:$0x1] %vm144, %v493
    %v496 = vld [vmem:[#allocation2 + $0x6] sm:$0x1]
    %v497 = vld [vmem:[#allocation4] sm:$0xff]
    %v498 = vld [vmem:[#allocation4 + $0x8] sm:$0xff]
    %v499 = vld [vmem:[#allocation4 + $0x10] sm:$0xff]
    %v500 = vld [vmem:[#allocation4 + $0x18] sm:$0xff]
    %v501 = vsel %vm49, %v493, 0
    %503 = vmatpush.msra.mxu0 0.0
    %504 = vmatpush.msra.mxu0 0.0
    %505 = vmatpush.msra.mxu0 0.0
    %506 = vmatpush.msra.mxu0 0.0
    %507 = vmatpush.msra.mxu0 0.0
    %508 = vmatpush.msra.mxu0 0.0
    %509 = vmatpush.msra.mxu0 0.0
    %510 = vmatpush.msra.mxu0 0.0
    %511 = vmatpush.msra.mxu0 0.0
    %512 = vmatpush.msra.mxu0 0.0
    %513 = vmatpush.msra.mxu0 0.0
    %514 = vmatpush.msra.mxu0 0.0
    %515 = vmatpush.msra.mxu0 %v500
    %516 = vmatpush.msra.mxu0 %v499
    %517 = vmatpush.msra.mxu0 %v498
    %518 = vmatpush.msra.mxu0 %v497
    %519 = vmatmul.f32.gmra.mxu0 %v501
    %v520 = vpop.f32.mrf.mxu0
    %v521 = vadd.f32 0.0, %v520
    %522 = vdwg.mxu0
    %v523 = vadd.f32 %v496, %v521
    %v524 = vxor.u32 %v523, 2147483648
    %v525 = vmul.f32 %v524, 1.442695
    %v526 = vpow.pop %v525
    %v527 = vadd.f32 %v526, 1.0
    %v528 = vrcp.pop %v527
    %v529 = vmul.f32 %v527, %v528
    %v530 = vsub.f32 1.0, %v529
    %v531 = vmul.f32 %v528, %v530
    %v532 = vadd.f32 %v528, %v531
    %vm533 = vweird.f32 %v527
    %vm534 = vweird.f32 %v528
    %vm535 = vmor %vm533, %vm534
    %v536 = vsel %vm535, %v528, %v532
    %v537 = vand.u32 2147483647, %v527
    %vm538 = vcmp.eq.f32.partialorder %v537, 8.507059e+37
    %v539 = vand.u32 %v527, 2147483648
    %v540 = vor.u32 1.1754944e-38, %v539
    %v541 = vsel %vm538, %v540, %v536
    %v542 = vmul.f32 1.0, %v541
    %v543 = vtanh.pop %v523
    %v544 = vmul.f32 %v542, %v484
    %546 = vrot.lane.b32.xlu0 %v543, 64
    %v547 = vpop.permute.xlu0 %546
    %v549 = vmul.f32 %v542, %v547
    %551 = vrot.lane.b32.xlu0 %v549, 32
    %v552 = vpop.permute.xlu0 %551
    %v554 = vadd.f32 %v544, %v552
    %v555 = vtanh.pop %v554
    %557 = vrot.lane.b32.xlu0 %v555, 64
    %v558 = vpop.permute.xlu0 %557
    %v560 = vmul.f32 %v542, %v558
    %562 = vrot.lane.b32.xlu0 %v560, 32
    %v563 = vpop.permute.xlu0 %562
    %565 = vst.msk [vmem:[#allocation3 + $0x6] sm:$0x1] %vm144, %v563
    %v566 = vld [vmem:[#allocation2 + $0x7] sm:$0x1]
    %v567 = vld [vmem:[#allocation4] sm:$0xff]
    %v568 = vld [vmem:[#allocation4 + $0x8] sm:$0xff]
    %v569 = vld [vmem:[#allocation4 + $0x10] sm:$0xff]
    %v570 = vld [vmem:[#allocation4 + $0x18] sm:$0xff]
    %v571 = vsel %vm49, %v563, 0
    %573 = vmatpush.msra.mxu0 0.0
    %574 = vmatpush.msra.mxu0 0.0
    %575 = vmatpush.msra.mxu0 0.0
    %576 = vmatpush.msra.mxu0 0.0
    %577 = vmatpush.msra.mxu0 0.0
    %578 = vmatpush.msra.mxu0 0.0
    %579 = vmatpush.msra.mxu0 0.0
    %580 = vmatpush.msra.mxu0 0.0
    %581 = vmatpush.msra.mxu0 0.0
    %582 = vmatpush.msra.mxu0 0.0
    %583 = vmatpush.msra.mxu0 0.0
    %584 = vmatpush.msra.mxu0 0.0
    %585 = vmatpush.msra.mxu0 %v570
    %586 = vmatpush.msra.mxu0 %v569
    %587 = vmatpush.msra.mxu0 %v568
    %588 = vmatpush.msra.mxu0 %v567
    %589 = vmatmul.f32.gmra.mxu0 %v571
    %v590 = vpop.f32.mrf.mxu0
    %v591 = vadd.f32 0.0, %v590
    %592 = vdwg.mxu0
    %v593 = vadd.f32 %v566, %v591
    %v594 = vxor.u32 %v593, 2147483648
    %v595 = vmul.f32 %v594, 1.442695
    %v596 = vpow.pop %v595
    %v597 = vadd.f32 %v596, 1.0
    %v598 = vrcp.pop %v597
    %v599 = vmul.f32 %v597, %v598
    %v600 = vsub.f32 1.0, %v599
    %v601 = vmul.f32 %v598, %v600
    %v602 = vadd.f32 %v598, %v601
    %vm603 = vweird.f32 %v597
    %vm604 = vweird.f32 %v598
    %vm605 = vmor %vm603, %vm604
    %v606 = vsel %vm605, %v598, %v602
    %v607 = vand.u32 2147483647, %v597
    %vm608 = vcmp.eq.f32.partialorder %v607, 8.507059e+37
    %v609 = vand.u32 %v597, 2147483648
    %v610 = vor.u32 1.1754944e-38, %v609
    %v611 = vsel %vm608, %v610, %v606
    %v612 = vmul.f32 1.0, %v611
    %v613 = vtanh.pop %v593
    %v614 = vmul.f32 %v612, %v554
    %616 = vrot.lane.b32.xlu0 %v613, 64
    %v617 = vpop.permute.xlu0 %616
    %v619 = vmul.f32 %v612, %v617
    %621 = vrot.lane.b32.xlu0 %v619, 32
    %v622 = vpop.permute.xlu0 %621
    %v624 = vadd.f32 %v614, %v622
    %v625 = vtanh.pop %v624
    %627 = vrot.lane.b32.xlu0 %v625, 64
    %v628 = vpop.permute.xlu0 %627
    %v630 = vmul.f32 %v612, %v628
    %632 = vrot.lane.b32.xlu0 %v630, 32
    %v633 = vpop.permute.xlu0 %632
    %635 = vst.msk [vmem:[#allocation3 + $0x7] sm:$0x1] %vm144, %v633
    %v636 = vld [vmem:[#allocation3] sm:$0xff]
    %v637 = vld [vmem:[%s4] sm:$0xff]
    %v638 = vld [vmem:[%s4 + $0x8] sm:$0xff]
    %v639 = vld [vmem:[%s4 + $0x10] sm:$0xff]
    %v640 = vld [vmem:[%s4 + $0x18] sm:$0xff]
    %v641 = vld [vmem:[%s5] sm:$0x1]
    %v643 = vperm.slane %v641, 0
    %v646 = vsel %vm49, %v636, 0
    %648 = vmatpush.msra.mxu0 0.0
    %649 = vmatpush.msra.mxu0 0.0
    %650 = vmatpush.msra.mxu0 0.0
    %651 = vmatpush.msra.mxu0 0.0
    %652 = vmatpush.msra.mxu0 0.0
    %653 = vmatpush.msra.mxu0 0.0
    %654 = vmatpush.msra.mxu0 0.0
    %655 = vmatpush.msra.mxu0 0.0
    %656 = vmatpush.msra.mxu0 0.0
    %657 = vmatpush.msra.mxu0 0.0
    %658 = vmatpush.msra.mxu0 0.0
    %659 = vmatpush.msra.mxu0 0.0
    %660 = vmatpush.msra.mxu0 %v640
    %661 = vmatpush.msra.mxu0 %v639
    %662 = vmatpush.msra.mxu0 %v638
    %663 = vmatpush.msra.mxu0 %v637
    %664 = vmatmul.f32.gmra.mxu0 %v646
    %v665 = vpop.f32.mrf.mxu0
    %v666 = vadd.f32 %v643, %v665
    %667 = vdwg.mxu0
    %vm668 = vcmask 64512
    %v669 = vsel %vm668, %v666, -inf
    %670 = vmax.xlane.f32.xlu0 %v669
    %v671 = vpop.xlane.xlu0 %670
    %v672 = vsub.f32 %v666, %v671
    %v673 = vmul.f32 %v672, 1.442695
    %v674 = vpow.pop %v673
    %v675 = vsel %vm668, %v674, 0.0
    %676 = vadd.xlane.f32.xlu0 %v675
    %v677 = vpop.xlane.xlu0 %676
    %v678 = vlog2.pop %v677
    %v679 = vmul.f32 %v678, 0.6931472
    %v680 = vsub.f32 %v672, %v679
    %681 = vst.msk [vmem:[#allocation7] sm:$0xff] %vm668, %v680
    // Predicated region
    $region30: #{tpu_custom_call.1} parent=1 // pred_check
      _
    $region31: #{tpu_custom_call.1} parent=1 // pred_check_branch
      %683 = sbr.rel (0) target = $region33
    $region32: #{tpu_custom_call.1} parent=1 // pred_region
      %685 = vsyncadd [#allocation6], 0
      %s687 = sshll.u32 [#allocation7], 4
      %s688 = int_to_ptr.vmem [resolvable:$true] %s687
      %s689 = sshll.u32 %s6, 4
      %s690 = int_to_ptr.hbm [resolvable:$true] %s689
      %692 = dma.vmem_to_hbm [thread:$0]  %s688, 128, %s690, [#allocation6]
    $region33: #{tpu_custom_call.1} parent=1 // pred_fallthru
      _
    // Predicated region
    $region34: #{tpu_custom_call.1} parent=1 // pred_check
      _
    $region35: #{tpu_custom_call.1} parent=1 // pred_check_branch
      %694 = sbr.rel (0) target = $region37
    $region36: #{tpu_custom_call.1} parent=1 // pred_region
      %696 = dma.done [#allocation6], 128
    $region37: #{tpu_custom_call.1} parent=1 // pred_fallthru
      _
    %697 = vsyncpa [#allocation5], 1
    %698 = vsyncpa [#allocation6], 1

</llo_original>
